<compile_context>
chip_gen: v7x
topology: tpu7x:2x2x1
jax: 0.10.0
libtpu: 0.0.40
codegen_flags: <defaults>
</compile_context>

<pallas_src>
import functools

import jax
import jax.numpy as jnp
from jax.experimental import pallas as pl
from jax.experimental.pallas import tpu as pltpu

ALPHA = 0.85
C1 = 0.01 ** 2
C2 = 0.03 ** 2
C1_81 = 81.0 * C1   # 1/9 pool normalization folded into the constants
C2_81 = 81.0 * C2


def _ssim_l1_kernel(x_ref, y_ref, ssim_ref, l1_ref, *, group_w):
    # x_ref / y_ref: (B, H, Wg) block of raw inputs. Wg = k * group_w packed
    # images along the lane axis; all math in f32.
    xr = x_ref[...].astype(jnp.float32)
    yr = y_ref[...].astype(jnp.float32)
    B, H, Wg = xr.shape

    # L1 on the raw inputs: |(es+1)/2 - (ta+1)/2| == 0.5*|es - ta|; the 0.5
    # is applied to the summed result in the wrapper.
    l1_sum = jnp.sum(jnp.abs(xr - yr))

    x = xr * 0.5 + 0.5          # (es + 1) / 2
    y = yr * 0.5 + 0.5          # (ta + 1) / 2

    row = jax.lax.broadcasted_iota(jnp.int32, (B, H, Wg), 1)
    col = jax.lax.broadcasted_iota(jnp.int32, (B, H, Wg), 2)
    if group_w < Wg:            # lane packing: boundaries are per image group
        col = col % group_w
    top = row == 0
    bot = row == H - 1
    lft = col == 0
    rgt = col == group_w - 1

    def vshift(a):
        # Reflect(1) vertical neighbors via XLU sublane rotates + row fixup.
        dn = pltpu.roll(a, shift=1, axis=1)        # a[i-1]  (wraps at i=0)
        up = pltpu.roll(a, shift=H - 1, axis=1)    # a[i+1]  (wraps at i=H-1)
        am1 = jnp.where(top, up, dn)               # reflect: row 0   -> a[1]
        ap1 = jnp.where(bot, dn, up)               # reflect: row H-1 -> a[H-2]
        return am1, ap1

    xm1, xp1 = vshift(x)
    ym1, yp1 = vshift(y)

    # Vertical 3-tap sums; the shifted operands are reused for the squared /
    # cross pools instead of shifting x*x, y*y, x*y again.
    r_x = xm1 + x + xp1
    r_y = ym1 + y + yp1
    r_xx = xm1 * xm1 + x * x + xp1 * xp1
    r_yy = ym1 * ym1 + y * y + yp1 * yp1
    r_xy = xm1 * ym1 + x * y + xp1 * yp1

    def hsum3(r):
        # Reflect(1) horizontal 3-tap sum via XLU lane rotates + col fixup
        # (fixup is per image group, so packed images never interact).
        lnb = pltpu.roll(r, shift=1, axis=2)        # r[j-1]
        rnb = pltpu.roll(r, shift=Wg - 1, axis=2)   # r[j+1]
        lf = jnp.where(lft, rnb, lnb)               # reflect: col 0   -> r[1]
        rt = jnp.where(rgt, lnb, rnb)               # reflect: col W-1 -> r[W-2]
        return lf + r + rt

    s_x = hsum3(r_x)            # 9 * mu_x
    s_y = hsum3(r_y)            # 9 * mu_y
    s_xx = hsum3(r_xx)          # 9 * E[x^2]
    s_yy = hsum3(r_yy)          # 9 * E[y^2]
    s_xy = hsum3(r_xy)          # 9 * E[x*y]

    # SSIM with the (1/81)^2 normalization cancelled between num. and denom.
    sxsy = s_x * s_y
    sx2 = s_x * s_x
    sy2 = s_y * s_y
    ssim_n = (2.0 * sxsy + C1_81) * (18.0 * s_xy - 2.0 * sxsy + C2_81)
    ssim_d = (sx2 + sy2 + C1_81) * (9.0 * (s_xx + s_yy) - sx2 - sy2 + C2_81)

    # EUP approx reciprocal + one Newton step (~1e-7 rel error), keeping the
    # divide off the saturated VALU path. ssim_d > 0 by Cauchy-Schwarz.
    rcp = pl.reciprocal(ssim_d, approx=True)
    rcp = rcp * (2.0 - ssim_d * rcp)
    ssim_map = jnp.clip((1.0 - ssim_n * rcp) * 0.5, 0.0, 1.0)

    # Lane-dense (8, 128) unmasked stores of per-block partial sums; the
    # wrapper reads [:, 0, 0] and reduces across blocks.
    ssim_ref[...] = jnp.broadcast_to(jnp.sum(ssim_map), ssim_ref.shape)
    l1_ref[...] = jnp.broadcast_to(l1_sum, l1_ref.shape)


def _round_up(a, b):
    return -(-a // b) * b


def _vmem_budget_bytes():
    """Generation-aware VMEM cap for the kernel working set."""
    try:
        vmem = pltpu.get_tpu_info().vmem_capacity_bytes
    except Exception:  # conservative (v7x-sized, 64 MiB) fallback
        vmem = 64 * 1024 * 1024
    # Leave headroom below physical VMEM (v7x: 64 MiB/TC); never ask for more
    # than 96 MiB even on 128 MiB (v5e/v6e) parts.
    return max(32 * 1024 * 1024, min(vmem - 16 * 1024 * 1024, 96 * 1024 * 1024))


def ssim_l1_loss(es, ta, alpha=ALPHA):
    """Returns [alpha * mean(ssim_map), (1 - alpha) * mean(|es01 - ta01|)]."""
    N, C, H, W = es.shape
    assert H >= 2 and W >= 2, "ReflectionPad2d(1) needs spatial dims >= 2"
    nc = N * C
    n_real = nc * H * W        # real element count for the means

    x = es.reshape(nc, H, W)   # contiguous collapse -> no HBM copy
    y = ta.reshape(nc, H, W)

    # The 3x3 box filter is symmetric, so put the larger spatial dim on the
    # 128-wide lane (last) axis.
    if H > W:
        x = jnp.swapaxes(x, 1, 2)
        y = jnp.swapaxes(y, 1, 2)
        H, W = W, H

    # Lane packing: for narrow images pack k images side by side along lanes.
    k = max(1, 128 // W) if W < 128 else 1
    nc_pad = _round_up(nc, k)
    if nc_pad != nc:
        # Zero-padded images contribute exactly 0 to both sums
        # (constant x == y -> ssim_map == 0, |x - y| == 0), so this is exact.
        zpad = jnp.zeros((nc_pad - nc, H, W), x.dtype)
        x = jnp.concatenate([x, zpad], axis=0)
        y = jnp.concatenate([y, zpad], axis=0)
    n_groups = nc_pad // k
    Wg = k * W
    if k > 1:
        x = x.reshape(n_groups, k, H, W).transpose(0, 2, 1, 3).reshape(n_groups, H, Wg)
        y = y.reshape(n_groups, k, H, W).transpose(0, 2, 1, 3).reshape(n_groups, H, Wg)

    # Block sizing: inputs (double-buffered) + ~15 live f32 (B, H, Wg)
    # temporaries ~= 80 B / block element; keep the working set <= half the
    # VMEM cap, amortize the ~0.35 us/step grid overhead, and keep the grid
    # at >= 2 steps when possible so both v7x TensorCores are used.
    vmem_cap = _vmem_budget_bytes()
    group_elems = H * Wg
    budget_elems = max(group_elems, vmem_cap // (2 * 80))
    target_b = max(1, min(n_groups, budget_elems // group_elems))
    steps = max(1, -(-n_groups // target_b))
    if n_groups >= 2:
        steps = max(steps, 2)
    B = -(-n_groups // steps)
    ng_pad = steps * B
    if ng_pad != n_groups:
        zpad = jnp.zeros((ng_pad - n_groups, H, Wg), x.dtype)
        x = jnp.concatenate([x, zpad], axis=0)
        y = jnp.concatenate([y, zpad], axis=0)
    grid_n = steps

    # TODO(synk): strip-tile H with a 1-row overlapping halo for very large
    # images whose whole-image temporaries would not fit v7x's 64 MiB VMEM.

    kernel = functools.partial(_ssim_l1_kernel, group_w=W)
    ssim_p, l1_p = pl.pallas_call(
        kernel,
        out_shape=(
            jax.ShapeDtypeStruct((grid_n, 8, 128), jnp.float32),
            jax.ShapeDtypeStruct((grid_n, 8, 128), jnp.float32),
        ),
        grid_spec=pltpu.PrefetchScalarGridSpec(
            num_scalar_prefetch=0,
            grid=(grid_n,),
            in_specs=[
                pl.BlockSpec((B, H, Wg), lambda i: (i, 0, 0)),
                pl.BlockSpec((B, H, Wg), lambda i: (i, 0, 0)),
            ],
            out_specs=(
                pl.BlockSpec((1, 8, 128), lambda i: (i, 0, 0)),
                pl.BlockSpec((1, 8, 128), lambda i: (i, 0, 0)),
            ),
        ),
        compiler_params=pltpu.CompilerParams(
            dimension_semantics=("parallel",),   # independent blocks -> megacore OK
            vmem_limit_bytes=vmem_cap,
        ),
    )(x, y)

    inv_total = 1.0 / float(n_real)
    ssim_mean = jnp.sum(ssim_p[:, 0, 0]) * inv_total
    l1_mean = jnp.sum(l1_p[:, 0, 0]) * (0.5 * inv_total)   # 0.5 = folded range scale
    return [alpha * ssim_mean, (1.0 - alpha) * l1_mean]


def _reference_loss(es, ta, alpha=ALPHA):
    """Pure-JAX reference mirroring the PyTorch module exactly."""
    x = (es.astype(jnp.float32) + 1.0) / 2.0
    y = (ta.astype(jnp.float32) + 1.0) / 2.0
    pad = ((0, 0), (0, 0), (1, 1), (1, 1))
    xp = jnp.pad(x, pad, mode="reflect")
    yp = jnp.pad(y, pad, mode="reflect")
    H, W = x.shape[2], x.shape[3]

    def pool(a):
        s = 0.0
        for di in range(3):
            for dj in range(3):
                s = s + a[:, :, di:di + H, dj:dj + W]
        return s / 9.0

    mu_x, mu_y = pool(xp), pool(yp)
    sigma_x = pool(xp * xp) - mu_x ** 2
    sigma_y = pool(yp * yp) - mu_y ** 2
    sigma_xy = pool(xp * yp) - mu_x * mu_y
    n = (2 * mu_x * mu_y + C1) * (2 * sigma_xy + C2)
    d = (mu_x ** 2 + mu_y ** 2 + C1) * (sigma_x + sigma_y + C2)
    ssim_map = jnp.clip((1 - n / d) / 2, 0.0, 1.0)
    return [alpha * ssim_map.mean(), (1 - alpha) * jnp.abs(x - y).mean()]


if __name__ == "__main__":
    key = jax.random.PRNGKey(0)
    k1, k2 = jax.random.split(key)
    N, C, H, W = 2, 4, 16, 16
    es = jax.random.uniform(k1, (N, C, H, W), jnp.float32, -1.0, 1.0)
    ta = jax.random.uniform(k2, (N, C, H, W), jnp.float32, -1.0, 1.0)

    ssim_loss, l1_loss = ssim_l1_loss(es, ta)
    jax.block_until_ready(ssim_loss)
    jax.block_until_ready(l1_loss)

    ref_ssim, ref_l1 = _reference_loss(es, ta)
    assert jnp.allclose(ssim_loss, ref_ssim, atol=1e-5, rtol=1e-5), (ssim_loss, ref_ssim)
    assert jnp.allclose(l1_loss, ref_l1, atol=1e-5, rtol=1e-5), (l1_loss, ref_l1)

    print("KERNEL_OK")
</pallas_src>

<mosaic_0001>
module attributes {stable_mosaic.version = 11 : i64} {
  func.func @_ssim_l1_kernel(%arg0: i32, %arg1: memref<1x16x128xf32, #tpu.memory_space<vmem>>, %arg2: memref<1x16x128xf32, #tpu.memory_space<vmem>>, %arg3: memref<1x8x128xf32, #tpu.memory_space<vmem>>, %arg4: memref<1x8x128xf32, #tpu.memory_space<vmem>>) attributes {dimension_semantics = [#tpu.dimension_semantics<parallel>], iteration_bounds = array<i64: 1>, scalar_prefetch = 0 : i64, scratch_operands = 0 : i64, tpu.core_type = #tpu.core_type<tc>, window_params = [{transform_indices = @transform_0, window_bounds = array<i64: 1, 16, 128>}, {transform_indices = @transform_1, window_bounds = array<i64: 1, 16, 128>}, {transform_indices = @transform_2, window_bounds = array<i64: 1, 8, 128>}, {transform_indices = @transform_3, window_bounds = array<i64: 1, 8, 128>}]} {
    %c0 = arith.constant 0 : index
    %c0_0 = arith.constant 0 : index
    %c0_1 = arith.constant 0 : index
    %0 = vector.load %arg1[%c0, %c0_0, %c0_1] : memref<1x16x128xf32, #tpu.memory_space<vmem>>, vector<1x16x128xf32>
    %c0_2 = arith.constant 0 : index
    %c0_3 = arith.constant 0 : index
    %c0_4 = arith.constant 0 : index
    %1 = vector.load %arg2[%c0_2, %c0_3, %c0_4] : memref<1x16x128xf32, #tpu.memory_space<vmem>>, vector<1x16x128xf32>
    %2 = arith.subf %0, %1 : vector<1x16x128xf32>
    %3 = math.absf %2 : vector<1x16x128xf32>
    %4 = vector.shape_cast %3 : vector<1x16x128xf32> to vector<1x1x16x128xf32>
    %cst = arith.constant dense<0.000000e+00> : vector<1xf32>
    %5 = vector.multi_reduction <add>, %4, %cst [1, 2, 3] : vector<1x1x16x128xf32> to vector<1xf32>
    %6 = vector.shape_cast %5 : vector<1xf32> to vector<1x1x1x1xf32>
    %7 = vector.extract %6[0, 0, 0, 0] : f32 from vector<1x1x1x1xf32>
    %cst_5 = arith.constant 5.000000e-01 : f32
    %8 = vector.broadcast %cst_5 : f32 to vector<1x16x128xf32>
    %9 = arith.mulf %0, %8 : vector<1x16x128xf32>
    %cst_6 = arith.constant 5.000000e-01 : f32
    %10 = vector.broadcast %cst_6 : f32 to vector<1x16x128xf32>
    %11 = arith.addf %9, %10 : vector<1x16x128xf32>
    %cst_7 = arith.constant 5.000000e-01 : f32
    %12 = vector.broadcast %cst_7 : f32 to vector<1x16x128xf32>
    %13 = arith.mulf %1, %12 : vector<1x16x128xf32>
    %cst_8 = arith.constant 5.000000e-01 : f32
    %14 = vector.broadcast %cst_8 : f32 to vector<1x16x128xf32>
    %15 = arith.addf %13, %14 : vector<1x16x128xf32>
    %16 = tpu.iota {dimensions = array<i32: 1>} : vector<1x16x128xi32>
    %17 = tpu.iota {dimensions = array<i32: 2>} : vector<1x16x128xi32>
    %c16_i32 = arith.constant 16 : i32
    %c0_i32 = arith.constant 0 : i32
    %18 = arith.cmpi eq, %c16_i32, %c0_i32 : i32
    %c1_i32 = arith.constant 1 : i32
    %19 = arith.select %18, %c1_i32, %c16_i32 : i32
    %20 = vector.broadcast %19 : i32 to vector<1x16x128xi32>
    %21 = arith.remsi %17, %20 : vector<1x16x128xi32>
    %c0_i32_9 = arith.constant 0 : i32
    %22 = vector.broadcast %c0_i32_9 : i32 to vector<1x16x128xi32>
    %23 = arith.cmpi ne, %21, %22 : vector<1x16x128xi32>
    %c0_i32_10 = arith.constant 0 : i32
    %24 = vector.broadcast %c0_i32_10 : i32 to vector<1x16x128xi32>
    %25 = arith.cmpi slt, %21, %24 : vector<1x16x128xi32>
    %c0_i32_11 = arith.constant 0 : i32
    %26 = arith.cmpi slt, %19, %c0_i32_11 : i32
    %27 = vector.broadcast %26 : i1 to vector<1x16x128xi1>
    %28 = vector.broadcast %27 : vector<1x16x128xi1> to vector<1x16x128xi1>
    %29 = arith.xori %25, %28 : vector<1x16x128xi1>
    %30 = arith.andi %29, %23 : vector<1x16x128xi1>
    %31 = vector.broadcast %19 : i32 to vector<1x16x128xi32>
    %32 = arith.addi %21, %31 : vector<1x16x128xi32>
    %33 = arith.select %30, %32, %21 : vector<1x16x128xi1>, vector<1x16x128xi32>
    %c0_i32_12 = arith.constant 0 : i32
    %34 = vector.broadcast %c0_i32_12 : i32 to vector<1x16x128xi32>
    %35 = arith.cmpi eq, %16, %34 : vector<1x16x128xi32>
    %c15_i32 = arith.constant 15 : i32
    %36 = vector.broadcast %c15_i32 : i32 to vector<1x16x128xi32>
    %37 = arith.cmpi eq, %16, %36 : vector<1x16x128xi32>
    %c0_i32_13 = arith.constant 0 : i32
    %38 = vector.broadcast %c0_i32_13 : i32 to vector<1x16x128xi32>
    %39 = arith.cmpi eq, %33, %38 : vector<1x16x128xi32>
    %c15_i32_14 = arith.constant 15 : i32
    %40 = vector.broadcast %c15_i32_14 : i32 to vector<1x16x128xi32>
    %41 = arith.cmpi eq, %33, %40 : vector<1x16x128xi32>
    %c1_i32_15 = arith.constant 1 : i32
    %42 = tpu.dynamic_rotate %11 by %c1_i32_15 dim 1 : vector<1x16x128xf32>, i32 -> vector<1x16x128xf32>
    %c15_i32_16 = arith.constant 15 : i32
    %43 = tpu.dynamic_rotate %11 by %c15_i32_16 dim 1 : vector<1x16x128xf32>, i32 -> vector<1x16x128xf32>
    %44 = arith.select %35, %43, %42 : vector<1x16x128xi1>, vector<1x16x128xf32>
    %45 = arith.select %37, %42, %43 : vector<1x16x128xi1>, vector<1x16x128xf32>
    %c1_i32_17 = arith.constant 1 : i32
    %46 = tpu.dynamic_rotate %15 by %c1_i32_17 dim 1 : vector<1x16x128xf32>, i32 -> vector<1x16x128xf32>
    %c15_i32_18 = arith.constant 15 : i32
    %47 = tpu.dynamic_rotate %15 by %c15_i32_18 dim 1 : vector<1x16x128xf32>, i32 -> vector<1x16x128xf32>
    %48 = arith.select %35, %47, %46 : vector<1x16x128xi1>, vector<1x16x128xf32>
    %49 = arith.select %37, %46, %47 : vector<1x16x128xi1>, vector<1x16x128xf32>
    %50 = arith.addf %44, %11 : vector<1x16x128xf32>
    %51 = arith.addf %50, %45 : vector<1x16x128xf32>
    %52 = arith.addf %48, %15 : vector<1x16x128xf32>
    %53 = arith.addf %52, %49 : vector<1x16x128xf32>
    %54 = arith.mulf %44, %44 : vector<1x16x128xf32>
    %55 = arith.mulf %11, %11 : vector<1x16x128xf32>
    %56 = arith.addf %54, %55 : vector<1x16x128xf32>
    %57 = arith.mulf %45, %45 : vector<1x16x128xf32>
    %58 = arith.addf %56, %57 : vector<1x16x128xf32>
    %59 = arith.mulf %48, %48 : vector<1x16x128xf32>
    %60 = arith.mulf %15, %15 : vector<1x16x128xf32>
    %61 = arith.addf %59, %60 : vector<1x16x128xf32>
    %62 = arith.mulf %49, %49 : vector<1x16x128xf32>
    %63 = arith.addf %61, %62 : vector<1x16x128xf32>
    %64 = arith.mulf %44, %48 : vector<1x16x128xf32>
    %65 = arith.mulf %11, %15 : vector<1x16x128xf32>
    %66 = arith.addf %64, %65 : vector<1x16x128xf32>
    %67 = arith.mulf %45, %49 : vector<1x16x128xf32>
    %68 = arith.addf %66, %67 : vector<1x16x128xf32>
    %c1_i32_19 = arith.constant 1 : i32
    %69 = tpu.dynamic_rotate %51 by %c1_i32_19 dim 2 : vector<1x16x128xf32>, i32 -> vector<1x16x128xf32>
    %c127_i32 = arith.constant 127 : i32
    %70 = tpu.dynamic_rotate %51 by %c127_i32 dim 2 : vector<1x16x128xf32>, i32 -> vector<1x16x128xf32>
    %71 = arith.select %39, %70, %69 : vector<1x16x128xi1>, vector<1x16x128xf32>
    %72 = arith.select %41, %69, %70 : vector<1x16x128xi1>, vector<1x16x128xf32>
    %73 = arith.addf %71, %51 : vector<1x16x128xf32>
    %74 = arith.addf %73, %72 : vector<1x16x128xf32>
    %c1_i32_20 = arith.constant 1 : i32
    %75 = tpu.dynamic_rotate %53 by %c1_i32_20 dim 2 : vector<1x16x128xf32>, i32 -> vector<1x16x128xf32>
    %c127_i32_21 = arith.constant 127 : i32
    %76 = tpu.dynamic_rotate %53 by %c127_i32_21 dim 2 : vector<1x16x128xf32>, i32 -> vector<1x16x128xf32>
    %77 = arith.select %39, %76, %75 : vector<1x16x128xi1>, vector<1x16x128xf32>
    %78 = arith.select %41, %75, %76 : vector<1x16x128xi1>, vector<1x16x128xf32>
    %79 = arith.addf %77, %53 : vector<1x16x128xf32>
    %80 = arith.addf %79, %78 : vector<1x16x128xf32>
    %c1_i32_22 = arith.constant 1 : i32
    %81 = tpu.dynamic_rotate %58 by %c1_i32_22 dim 2 : vector<1x16x128xf32>, i32 -> vector<1x16x128xf32>
    %c127_i32_23 = arith.constant 127 : i32
    %82 = tpu.dynamic_rotate %58 by %c127_i32_23 dim 2 : vector<1x16x128xf32>, i32 -> vector<1x16x128xf32>
    %83 = arith.select %39, %82, %81 : vector<1x16x128xi1>, vector<1x16x128xf32>
    %84 = arith.select %41, %81, %82 : vector<1x16x128xi1>, vector<1x16x128xf32>
    %85 = arith.addf %83, %58 : vector<1x16x128xf32>
    %86 = arith.addf %85, %84 : vector<1x16x128xf32>
    %c1_i32_24 = arith.constant 1 : i32
    %87 = tpu.dynamic_rotate %63 by %c1_i32_24 dim 2 : vector<1x16x128xf32>, i32 -> vector<1x16x128xf32>
    %c127_i32_25 = arith.constant 127 : i32
    %88 = tpu.dynamic_rotate %63 by %c127_i32_25 dim 2 : vector<1x16x128xf32>, i32 -> vector<1x16x128xf32>
    %89 = arith.select %39, %88, %87 : vector<1x16x128xi1>, vector<1x16x128xf32>
    %90 = arith.select %41, %87, %88 : vector<1x16x128xi1>, vector<1x16x128xf32>
    %91 = arith.addf %89, %63 : vector<1x16x128xf32>
    %92 = arith.addf %91, %90 : vector<1x16x128xf32>
    %c1_i32_26 = arith.constant 1 : i32
    %93 = tpu.dynamic_rotate %68 by %c1_i32_26 dim 2 : vector<1x16x128xf32>, i32 -> vector<1x16x128xf32>
    %c127_i32_27 = arith.constant 127 : i32
    %94 = tpu.dynamic_rotate %68 by %c127_i32_27 dim 2 : vector<1x16x128xf32>, i32 -> vector<1x16x128xf32>
    %95 = arith.select %39, %94, %93 : vector<1x16x128xi1>, vector<1x16x128xf32>
    %96 = arith.select %41, %93, %94 : vector<1x16x128xi1>, vector<1x16x128xf32>
    %97 = arith.addf %95, %68 : vector<1x16x128xf32>
    %98 = arith.addf %97, %96 : vector<1x16x128xf32>
    %99 = arith.mulf %74, %80 : vector<1x16x128xf32>
    %100 = arith.mulf %74, %74 : vector<1x16x128xf32>
    %101 = arith.mulf %80, %80 : vector<1x16x128xf32>
    %cst_28 = arith.constant 2.000000e+00 : f32
    %102 = vector.broadcast %cst_28 : f32 to vector<1x16x128xf32>
    %103 = arith.mulf %102, %99 : vector<1x16x128xf32>
    %cst_29 = arith.constant 8.100000e-03 : f32
    %104 = vector.broadcast %cst_29 : f32 to vector<1x16x128xf32>
    %105 = arith.addf %103, %104 : vector<1x16x128xf32>
    %cst_30 = arith.constant 1.800000e+01 : f32
    %106 = vector.broadcast %cst_30 : f32 to vector<1x16x128xf32>
    %107 = arith.mulf %106, %98 : vector<1x16x128xf32>
    %cst_31 = arith.constant 2.000000e+00 : f32
    %108 = vector.broadcast %cst_31 : f32 to vector<1x16x128xf32>
    %109 = arith.mulf %108, %99 : vector<1x16x128xf32>
    %110 = arith.subf %107, %109 : vector<1x16x128xf32>
    %cst_32 = arith.constant 7.290000e-02 : f32
    %111 = vector.broadcast %cst_32 : f32 to vector<1x16x128xf32>
    %112 = arith.addf %110, %111 : vector<1x16x128xf32>
    %113 = arith.mulf %105, %112 : vector<1x16x128xf32>
    %114 = arith.addf %100, %101 : vector<1x16x128xf32>
    %cst_33 = arith.constant 8.100000e-03 : f32
    %115 = vector.broadcast %cst_33 : f32 to vector<1x16x128xf32>
    %116 = arith.addf %114, %115 : vector<1x16x128xf32>
    %117 = arith.addf %86, %92 : vector<1x16x128xf32>
    %cst_34 = arith.constant 9.000000e+00 : f32
    %118 = vector.broadcast %cst_34 : f32 to vector<1x16x128xf32>
    %119 = arith.mulf %118, %117 : vector<1x16x128xf32>
    %120 = arith.subf %119, %100 : vector<1x16x128xf32>
    %121 = arith.subf %120, %101 : vector<1x16x128xf32>
    %cst_35 = arith.constant 7.290000e-02 : f32
    %122 = vector.broadcast %cst_35 : f32 to vector<1x16x128xf32>
    %123 = arith.addf %121, %122 : vector<1x16x128xf32>
    %124 = arith.mulf %116, %123 : vector<1x16x128xf32>
    %125 = tpu.reciprocal %124 {approx = true} : vector<1x16x128xf32> -> vector<1x16x128xf32>
    %126 = arith.mulf %124, %125 : vector<1x16x128xf32>
    %cst_36 = arith.constant 2.000000e+00 : f32
    %127 = vector.broadcast %cst_36 : f32 to vector<1x16x128xf32>
    %128 = arith.subf %127, %126 : vector<1x16x128xf32>
    %129 = arith.mulf %125, %128 : vector<1x16x128xf32>
    %130 = arith.mulf %113, %129 : vector<1x16x128xf32>
    %cst_37 = arith.constant 1.000000e+00 : f32
    %131 = vector.broadcast %cst_37 : f32 to vector<1x16x128xf32>
    %132 = arith.subf %131, %130 : vector<1x16x128xf32>
    %cst_38 = arith.constant 5.000000e-01 : f32
    %133 = vector.broadcast %cst_38 : f32 to vector<1x16x128xf32>
    %134 = arith.mulf %132, %133 : vector<1x16x128xf32>
    %cst_39 = arith.constant 0.000000e+00 : f32
    %cst_40 = arith.constant 1.000000e+00 : f32
    %135 = vector.broadcast %cst_39 : f32 to vector<1x16x128xf32>
    %136 = arith.maximumf %135, %134 : vector<1x16x128xf32>
    %137 = vector.broadcast %cst_40 : f32 to vector<1x16x128xf32>
    %138 = arith.minimumf %137, %136 : vector<1x16x128xf32>
    %139 = vector.shape_cast %138 : vector<1x16x128xf32> to vector<1x1x16x128xf32>
    %cst_41 = arith.constant dense<0.000000e+00> : vector<1xf32>
    %140 = vector.multi_reduction <add>, %139, %cst_41 [1, 2, 3] : vector<1x1x16x128xf32> to vector<1xf32>
    %141 = vector.shape_cast %140 : vector<1xf32> to vector<1x1x1x1xf32>
    %142 = vector.extract %141[0, 0, 0, 0] : f32 from vector<1x1x1x1xf32>
    %143 = vector.broadcast %142 : f32 to vector<1x8x128xf32>
    %c0_42 = arith.constant 0 : index
    %c0_43 = arith.constant 0 : index
    %c0_44 = arith.constant 0 : index
    %144 = vector.load %arg3[%c0_42, %c0_43, %c0_44] : memref<1x8x128xf32, #tpu.memory_space<vmem>>, vector<1x8x128xf32>
    tpu.vector_store %arg3[%c0_42, %c0_43, %c0_44], %143 {strides = array<i32>} : memref<1x8x128xf32, #tpu.memory_space<vmem>>, vector<1x8x128xf32>,
    %145 = vector.broadcast %7 : f32 to vector<1x8x128xf32>
    %c0_45 = arith.constant 0 : index
    %c0_46 = arith.constant 0 : index
    %c0_47 = arith.constant 0 : index
    %146 = vector.load %arg4[%c0_45, %c0_46, %c0_47] : memref<1x8x128xf32, #tpu.memory_space<vmem>>, vector<1x8x128xf32>
    tpu.vector_store %arg4[%c0_45, %c0_46, %c0_47], %145 {strides = array<i32>} : memref<1x8x128xf32, #tpu.memory_space<vmem>>, vector<1x8x128xf32>,
    return
  }
  func.func @transform_0(%arg0: i32) -> (i32, i32, i32) {
    %c0_i32 = arith.constant 0 : i32
    %c0_i32_0 = arith.constant 0 : i32
    %c0_i32_1 = arith.constant 0 : i32
    return %arg0, %c0_i32, %c0_i32_0 : i32, i32, i32
  }
  func.func @transform_1(%arg0: i32) -> (i32, i32, i32) {
    %c0_i32 = arith.constant 0 : i32
    %c0_i32_0 = arith.constant 0 : i32
    %c0_i32_1 = arith.constant 0 : i32
    return %arg0, %c0_i32, %c0_i32_0 : i32, i32, i32
  }
  func.func @transform_2(%arg0: i32) -> (i32, i32, i32) {
    %c0_i32 = arith.constant 0 : i32
    %c0_i32_0 = arith.constant 0 : i32
    %c0_i32_1 = arith.constant 0 : i32
    return %arg0, %c0_i32, %c0_i32_0 : i32, i32, i32
  }
  func.func @transform_3(%arg0: i32) -> (i32, i32, i32) {
    %c0_i32 = arith.constant 0 : i32
    %c0_i32_0 = arith.constant 0 : i32
    %c0_i32_1 = arith.constant 0 : i32
    return %arg0, %c0_i32, %c0_i32_0 : i32, i32, i32
  }
}

</mosaic_0001>

<llo_original>
// kernel: tpu_custom_call.1
$region0: #{tpu_custom_call.1}
  #allocation0 [shape = 'u32[]', space=smem, size = 0x4, offset = 0x4, fixed_abs, tag = 'smem constant byte address 0x4 - core index']
  #allocation1 [shape = 'u32[144,128]{1,0:T(1,128)}', space=vmem, size = 0x12000, scoped, tag = 'internal scratch']
  %s0 = inlined_call_operand.hbm [shape: f32[1,16,128], index: 0, kind: input, shape index: {}]
  %s1 = inlined_call_operand.hbm [shape: f32[1,16,128], index: 1, kind: input, shape index: {}]
  %s2 = inlined_call_operand.hbm [shape: f32[1,8,128], index: 2, kind: output, shape index: {0}]
  %s3 = inlined_call_operand.hbm [shape: f32[1,8,128], index: 3, kind: output, shape index: {1}]
  %4 = xla_tuple %s2, %s3
  %s5 = sld [smem:[#allocation0]]
  $region34: #{tpu_custom_call.1} parent=0
    _
  %s7 = ssub.s32 1, %s5
  %s8 = scalar_select 0, %s7, %s5
  $region1: #{tpu_custom_call.1} parent=0
    #allocation2 [shape = 'u8[8192]{0}', space=vmem, size = 0x2000, scoped, tag = 'input window, operand 0, single buffered']
    #allocation3 [shape = 's32[1]{0}', space=sflag, size = 0x4, scoped, tag = 'scoped memory for tpu_custom_call.1']
    #allocation4 [shape = 's32[1]{0}', space=sflag, size = 0x4, scoped, tag = 'scoped memory for tpu_custom_call.1']
    #allocation5 [shape = 'u8[8192]{0}', space=vmem, size = 0x2000, scoped, tag = 'input window, operand 1, single buffered']
    #allocation6 [shape = 's32[1]{0}', space=sflag, size = 0x4, scoped, tag = 'scoped memory for tpu_custom_call.1']
    #allocation7 [shape = 'u8[4096]{0}', space=vmem, size = 0x1000, scoped, tag = 'output window, operand 0, single buffered']
    #allocation8 [shape = 'u8[4096]{0}', space=vmem, size = 0x1000, scoped, tag = 'output window, operand 1, single buffered']
    #allocation9 [shape = 's32[1]{0}', space=sflag, size = 0x4, scoped, tag = 'scoped memory for tpu_custom_call.1']
    %9 = vsyncpa [#allocation3], 0
    %10 = vsyncpa [#allocation6], 0
    %11 = vsyncpa [#allocation4], 0
    %12 = vsyncpa [#allocation9], 0
    // Predicated region
    $region2: #{tpu_custom_call.1} parent=1 // pred_check
      _
    $region3: #{tpu_custom_call.1} parent=1 // pred_check_branch
      %14 = sbr.rel (0) target = $region5
    $region4: #{tpu_custom_call.1} parent=1 // pred_region
      %s16 = ssub.s32 256, 256
      %17 = vsyncadd [#allocation3], %s16
      %s18 = sshll.u32 [#allocation2], 4
      %s19 = int_to_ptr.vmem [resolvable:$true] %s18
      %24 = dma.hbm_to_vmem [thread:$0]  %s0, 256, %s19, [#allocation3], 128, 128, 8
    $region5: #{tpu_custom_call.1} parent=1 // pred_fallthru
      _
    // Predicated region
    $region6: #{tpu_custom_call.1} parent=1 // pred_check
      _
    $region7: #{tpu_custom_call.1} parent=1 // pred_check_branch
      %26 = sbr.rel (0) target = $region9
    $region8: #{tpu_custom_call.1} parent=1 // pred_region
      %s28 = ssub.s32 256, 256
      %29 = vsyncadd [#allocation6], %s28
      %s30 = sshll.u32 [#allocation5], 4
      %s31 = int_to_ptr.vmem [resolvable:$true] %s30
      %36 = dma.hbm_to_vmem [thread:$0]  %s1, 256, %s31, [#allocation6], 128, 128, 8
    $region9: #{tpu_custom_call.1} parent=1 // pred_fallthru
      _
    // Predicated region
    $region10: #{tpu_custom_call.1} parent=1 // pred_check
      _
    $region11: #{tpu_custom_call.1} parent=1 // pred_check_branch
      %38 = sbr.rel (0) target = $region13
    $region12: #{tpu_custom_call.1} parent=1 // pred_region
      %39 = dma.done [#allocation3], 256
    $region13: #{tpu_custom_call.1} parent=1 // pred_fallthru
      _
    // Predicated region
    $region14: #{tpu_custom_call.1} parent=1 // pred_check
      _
    $region15: #{tpu_custom_call.1} parent=1 // pred_check_branch
      %41 = sbr.rel (0) target = $region17
    $region16: #{tpu_custom_call.1} parent=1 // pred_region
      %42 = dma.done [#allocation6], 256
    $region17: #{tpu_custom_call.1} parent=1 // pred_fallthru
      _
    %v43 = vld [vmem:[#allocation2] sm:$0xff]
    %v44 = vld [vmem:[#allocation2 + $0x8] sm:$0xff]
    %v45 = vld [vmem:[#allocation5] sm:$0xff]
    %v46 = vld [vmem:[#allocation5 + $0x8] sm:$0xff]
    %v47 = vsub.f32 %v43, %v45
    %v48 = vsub.f32 %v44, %v46
    %v49 = vand.u32 2147483647, %v47
    %v50 = vand.u32 2147483647, %v48
    %v51 = vadd.f32 %v49, %v50
    %52 = vadd.xlane.f32.xlu0 %v51
    %v53 = vpop.xlane.xlu0 %52
    %v54 = vrot.slane %v53, 4
    %v55 = vadd.f32 %v53, %v54
    %v56 = vrot.slane %v55, 2
    %v57 = vadd.f32 %v55, %v56
    %v58 = vrot.slane %v57, 1
    %v59 = vadd.f32 %v57, %v58
    %s60 = vtos %v59
    %v61 = vmul.f32 %v43, 0.5
    %v62 = vmul.f32 %v44, 0.5
    %v63 = vadd.f32 %v61, 0.5
    %v64 = vadd.f32 %v62, 0.5
    %v65 = vmul.f32 %v45, 0.5
    %v66 = vmul.f32 %v46, 0.5
    %v67 = vadd.f32 %v65, 0.5
    %v68 = vadd.f32 %v66, 0.5
    %v69 = vlaneseq
    %v70 = vshrl.u32 %v69, 7
    %v71 = vadd.s32 %v70, 8
    %v72 = vlaneseq
    %v73 = vand.u32 %v72, 127
    %vm74 = vcmp.lt.s32.totalorder %v73, 0
    %v75 = vsub.s32 0, %v73
    %v76 = vsel %vm74, %v75, %v73
    %v77 = vshrl.u32 %v76, 4
    %v78 = vand.u32 %v76, 15
    %v79 = vsub.s32 0, %v78
    %v80 = vsel %vm74, %v79, %v78
    %vm81 = vcmp.ne.s32.totalorder %v80, 0
    %vm82 = vcmp.lt.s32.totalorder %v80, 0
    %vm83 = vmand %vm82, %vm81
    %v84 = vadd.s32 %v80, 16
    %v85 = vsel %vm83, %v84, %v80
    %vm86 = vcmp.eq.s32.totalorder %v70, 0
    %vm87 = vcmp.eq.s32.totalorder %v71, 0
    %vm88 = vcmp.eq.s32.totalorder %v70, 15
    %vm89 = vcmp.eq.s32.totalorder %v71, 15
    %vm90 = vcmp.eq.s32.totalorder %v85, 0
    %vm91 = vcmp.eq.s32.totalorder %v85, 15
    %v92 = vrot.slane %v63, 7
    %v93 = vrot.slane %v64, 7
    %vm94 = vcmp.lt.s32.totalorder %v70, 1
    %v95 = vsel %vm94, %v92, %v93
    %v96 = vsel %vm94, %v93, %v92
    %v97 = vrot.slane %v63, 1
    %v98 = vrot.slane %v64, 1
    %vm99 = vcmp.lt.s32.totalorder %v70, 7
    %v100 = vsel %vm99, %v97, %v98
    %v101 = vsel %vm99, %v98, %v97
    %v102 = vsel %vm86, %v100, %v96
    %v103 = vsel %vm87, %v101, %v95
    %v104 = vsel %vm88, %v96, %v100
    %v105 = vsel %vm89, %v95, %v101
    %v106 = vrot.slane %v67, 7
    %v107 = vrot.slane %v68, 7
    %v108 = vsel %vm94, %v106, %v107
    %v109 = vsel %vm94, %v107, %v106
    %v110 = vrot.slane %v67, 1
    %v111 = vrot.slane %v68, 1
    %v112 = vsel %vm99, %v110, %v111
    %v113 = vsel %vm99, %v111, %v110
    %v114 = vsel %vm86, %v112, %v109
    %v115 = vsel %vm87, %v113, %v108
    %v116 = vsel %vm88, %v109, %v112
    %v117 = vsel %vm89, %v108, %v113
    %v118 = vadd.f32 %v102, %v63
    %v119 = vadd.f32 %v103, %v64
    %v120 = vadd.f32 %v118, %v104
    %v121 = vadd.f32 %v119, %v105
    %v122 = vadd.f32 %v114, %v67
    %v123 = vadd.f32 %v115, %v68
    %v124 = vadd.f32 %v122, %v116
    %v125 = vadd.f32 %v123, %v117
    %v126 = vmul.f32 %v102, %v102
    %v127 = vmul.f32 %v103, %v103
    %v128 = vmul.f32 %v63, %v63
    %v129 = vmul.f32 %v64, %v64
    %v130 = vadd.f32 %v126, %v128
    %v131 = vadd.f32 %v127, %v129
    %v132 = vmul.f32 %v104, %v104
    %v133 = vmul.f32 %v105, %v105
    %v134 = vadd.f32 %v130, %v132
    %v135 = vadd.f32 %v131, %v133
    %v136 = vmul.f32 %v114, %v114
    %v137 = vmul.f32 %v115, %v115
    %v138 = vmul.f32 %v67, %v67
    %v139 = vmul.f32 %v68, %v68
    %v140 = vadd.f32 %v136, %v138
    %v141 = vadd.f32 %v137, %v139
    %v142 = vmul.f32 %v116, %v116
    %v143 = vmul.f32 %v117, %v117
    %v144 = vadd.f32 %v140, %v142
    %v145 = vadd.f32 %v141, %v143
    %v146 = vmul.f32 %v102, %v114
    %v147 = vmul.f32 %v103, %v115
    %v148 = vmul.f32 %v63, %v67
    %v149 = vmul.f32 %v64, %v68
    %v150 = vadd.f32 %v146, %v148
    %v151 = vadd.f32 %v147, %v149
    %v152 = vmul.f32 %v104, %v116
    %v153 = vmul.f32 %v105, %v117
    %v154 = vadd.f32 %v150, %v152
    %v155 = vadd.f32 %v151, %v153
    %156 = vrot.lane.b32.xlu0 %v120, 1
    %v157 = vpop.permute.xlu0 %156
    %158 = vrot.lane.b32.xlu0 %v121, 1
    %v159 = vpop.permute.xlu0 %158
    %160 = vrot.lane.b32.xlu0 %v120, 127
    %v161 = vpop.permute.xlu0 %160
    %162 = vrot.lane.b32.xlu0 %v121, 127
    %v163 = vpop.permute.xlu0 %162
    %v164 = vsel %vm90, %v161, %v157
    %v165 = vsel %vm90, %v163, %v159
    %v166 = vsel %vm91, %v157, %v161
    %v167 = vsel %vm91, %v159, %v163
    %v168 = vadd.f32 %v164, %v120
    %v169 = vadd.f32 %v165, %v121
    %v170 = vadd.f32 %v168, %v166
    %v171 = vadd.f32 %v169, %v167
    %172 = vrot.lane.b32.xlu0 %v124, 1
    %v173 = vpop.permute.xlu0 %172
    %174 = vrot.lane.b32.xlu0 %v125, 1
    %v175 = vpop.permute.xlu0 %174
    %176 = vrot.lane.b32.xlu0 %v124, 127
    %v177 = vpop.permute.xlu0 %176
    %178 = vrot.lane.b32.xlu0 %v125, 127
    %v179 = vpop.permute.xlu0 %178
    %v180 = vsel %vm90, %v177, %v173
    %v181 = vsel %vm90, %v179, %v175
    %v182 = vsel %vm91, %v173, %v177
    %v183 = vsel %vm91, %v175, %v179
    %v184 = vadd.f32 %v180, %v124
    %v185 = vadd.f32 %v181, %v125
    %v186 = vadd.f32 %v184, %v182
    %v187 = vadd.f32 %v185, %v183
    %188 = vrot.lane.b32.xlu0 %v134, 1
    %v189 = vpop.permute.xlu0 %188
    %190 = vrot.lane.b32.xlu0 %v135, 1
    %v191 = vpop.permute.xlu0 %190
    %192 = vrot.lane.b32.xlu0 %v134, 127
    %v193 = vpop.permute.xlu0 %192
    %194 = vrot.lane.b32.xlu0 %v135, 127
    %v195 = vpop.permute.xlu0 %194
    %v196 = vsel %vm90, %v193, %v189
    %v197 = vsel %vm90, %v195, %v191
    %v198 = vsel %vm91, %v189, %v193
    %v199 = vsel %vm91, %v191, %v195
    %v200 = vadd.f32 %v196, %v134
    %v201 = vadd.f32 %v197, %v135
    %v202 = vadd.f32 %v200, %v198
    %v203 = vadd.f32 %v201, %v199
    %204 = vrot.lane.b32.xlu0 %v144, 1
    %v205 = vpop.permute.xlu0 %204
    %206 = vrot.lane.b32.xlu0 %v145, 1
    %v207 = vpop.permute.xlu0 %206
    %208 = vrot.lane.b32.xlu0 %v144, 127
    %v209 = vpop.permute.xlu0 %208
    %210 = vrot.lane.b32.xlu0 %v145, 127
    %v211 = vpop.permute.xlu0 %210
    %v212 = vsel %vm90, %v209, %v205
    %v213 = vsel %vm90, %v211, %v207
    %v214 = vsel %vm91, %v205, %v209
    %v215 = vsel %vm91, %v207, %v211
    %v216 = vadd.f32 %v212, %v144
    %v217 = vadd.f32 %v213, %v145
    %v218 = vadd.f32 %v216, %v214
    %v219 = vadd.f32 %v217, %v215
    %220 = vrot.lane.b32.xlu0 %v154, 1
    %v221 = vpop.permute.xlu0 %220
    %222 = vrot.lane.b32.xlu0 %v155, 1
    %v223 = vpop.permute.xlu0 %222
    %224 = vrot.lane.b32.xlu0 %v154, 127
    %v225 = vpop.permute.xlu0 %224
    %226 = vrot.lane.b32.xlu0 %v155, 127
    %v227 = vpop.permute.xlu0 %226
    %v228 = vsel %vm90, %v225, %v221
    %v229 = vsel %vm90, %v227, %v223
    %v230 = vsel %vm91, %v221, %v225
    %v231 = vsel %vm91, %v223, %v227
    %v232 = vadd.f32 %v228, %v154
    %v233 = vadd.f32 %v229, %v155
    %v234 = vadd.f32 %v232, %v230
    %v235 = vadd.f32 %v233, %v231
    %v236 = vmul.f32 %v170, %v186
    %v237 = vmul.f32 %v171, %v187
    %v238 = vmul.f32 %v170, %v170
    %v239 = vmul.f32 %v171, %v171
    %v240 = vmul.f32 %v186, %v186
    %v241 = vmul.f32 %v187, %v187
    %v242 = vmul.f32 %v236, 2.0
    %v243 = vmul.f32 %v237, 2.0
    %v244 = vadd.f32 %v242, 0.0081
    %v245 = vadd.f32 %v243, 0.0081
    %v246 = vmul.f32 %v234, 18.0
    %v247 = vmul.f32 %v235, 18.0
    %v248 = vsub.f32 %v246, %v242
    %v249 = vsub.f32 %v247, %v243
    %v250 = vadd.f32 %v248, 0.0729
    %v251 = vadd.f32 %v249, 0.0729
    %v252 = vmul.f32 %v244, %v250
    %v253 = vmul.f32 %v245, %v251
    %v254 = vadd.f32 %v238, %v240
    %v255 = vadd.f32 %v239, %v241
    %v256 = vadd.f32 %v254, 0.0081
    %v257 = vadd.f32 %v255, 0.0081
    %v258 = vadd.f32 %v202, %v218
    %v259 = vadd.f32 %v203, %v219
    %v260 = vmul.f32 %v258, 9.0
    %v261 = vmul.f32 %v259, 9.0
    %v262 = vsub.f32 %v260, %v238
    %v263 = vsub.f32 %v261, %v239
    %v264 = vsub.f32 %v262, %v240
    %v265 = vsub.f32 %v263, %v241
    %v266 = vadd.f32 %v264, 0.0729
    %v267 = vadd.f32 %v265, 0.0729
    %v268 = vmul.f32 %v256, %v266
    %v269 = vmul.f32 %v257, %v267
    %v270 = vrcp.pop %v268
    %v271 = vrcp.pop %v269
    %v272 = vmul.f32 %v268, %v270
    %v273 = vmul.f32 %v269, %v271
    %v274 = vsub.f32 2.0, %v272
    %v275 = vsub.f32 2.0, %v273
    %v276 = vmul.f32 %v270, %v274
    %v277 = vmul.f32 %v271, %v275
    %v278 = vmul.f32 %v252, %v276
    %v279 = vmul.f32 %v253, %v277
    %v280 = vsub.f32 1.0, %v278
    %v281 = vsub.f32 1.0, %v279
    %v282 = vmul.f32 %v280, 0.5
    %v283 = vmul.f32 %v281, 0.5
    %v284 = vmax.f32 %v282, 0.0
    %v285 = vmax.f32 %v283, 0.0
    %v286 = vmin.f32 %v284, 1.0
    %v287 = vmin.f32 %v285, 1.0
    %v288 = vadd.f32 %v286, %v287
    %289 = vadd.xlane.f32.xlu0 %v288
    %v290 = vpop.xlane.xlu0 %289
    %v291 = vrot.slane %v290, 4
    %v292 = vadd.f32 %v290, %v291
    %v293 = vrot.slane %v292, 2
    %v294 = vadd.f32 %v292, %v293
    %v295 = vrot.slane %v294, 1
    %v296 = vadd.f32 %v294, %v295
    %s297 = vtos %v296
    %v298 = vstv %s297
    %299 = vst [vmem:[#allocation7] sm:$0xff] %v298
    %v300 = vstv %s60
    %301 = vst [vmem:[#allocation8] sm:$0xff] %v300
    // Predicated region
    $region18: #{tpu_custom_call.1} parent=1 // pred_check
      _
    $region19: #{tpu_custom_call.1} parent=1 // pred_check_branch
      %303 = sbr.rel (0) target = $region21
    $region20: #{tpu_custom_call.1} parent=1 // pred_region
      %s305 = ssub.s32 128, 128
      %306 = vsyncadd [#allocation4], %s305
      %s308 = sshll.u32 [#allocation7], 4
      %s309 = int_to_ptr.vmem [resolvable:$true] %s308
      %311 = dma.vmem_to_hbm [thread:$0]  %s309, 128, %s2, [#allocation4]
    $region21: #{tpu_custom_call.1} parent=1 // pred_fallthru
      _
    // Predicated region
    $region22: #{tpu_custom_call.1} parent=1 // pred_check
      _
    $region23: #{tpu_custom_call.1} parent=1 // pred_check_branch
      %313 = sbr.rel (0) target = $region25
    $region24: #{tpu_custom_call.1} parent=1 // pred_region
      %s315 = ssub.s32 128, 128
      %316 = vsyncadd [#allocation9], %s315
      %s318 = sshll.u32 [#allocation8], 4
      %s319 = int_to_ptr.vmem [resolvable:$true] %s318
      %321 = dma.vmem_to_hbm [thread:$0]  %s319, 128, %s3, [#allocation9]
    $region25: #{tpu_custom_call.1} parent=1 // pred_fallthru
      _
    // Predicated region
    $region26: #{tpu_custom_call.1} parent=1 // pred_check
      _
    $region27: #{tpu_custom_call.1} parent=1 // pred_check_branch
      %323 = sbr.rel (0) target = $region29
    $region28: #{tpu_custom_call.1} parent=1 // pred_region
      %324 = dma.done [#allocation4], 128
    $region29: #{tpu_custom_call.1} parent=1 // pred_fallthru
      _
    // Predicated region
    $region30: #{tpu_custom_call.1} parent=1 // pred_check
      _
    $region31: #{tpu_custom_call.1} parent=1 // pred_check_branch
      %326 = sbr.rel (0) target = $region33
    $region32: #{tpu_custom_call.1} parent=1 // pred_region
      %327 = dma.done [#allocation9], 128
    $region33: #{tpu_custom_call.1} parent=1 // pred_fallthru
      _
    %328 = vsyncpa [#allocation3], 1
    %329 = vsyncpa [#allocation6], 1
    %330 = vsyncpa [#allocation4], 1
    %331 = vsyncpa [#allocation9], 1

</llo_original>
